<compile_context>
chip_gen: v7x
topology: tpu7x:2x2x1
jax: 0.10.0
libtpu: 0.0.40
codegen_flags: <defaults>
</compile_context>

<pallas_src>
import functools

import jax
import jax.numpy as jnp
from jax.experimental import pallas as pl
from jax.experimental.pallas import tpu as pltpu

LANE = 128  # TPU lane width


def _round_up(x, m):
    return ((x + m - 1) // m) * m


# -----------------------------------------------------------------------------
# Kernels
# -----------------------------------------------------------------------------
def _gather_rows(tile_n, idx_sref, emb_ref, logits_ref):
    """Copy the emb-table rows selected by SMEM token ids into the logits tile."""
    base = pl.program_id(0) * tile_n
    for r in range(tile_n):                       # static unroll; tile_n small
        tok = idx_sref[base + r]                  # SMEM scalar read
        logits_ref[pl.ds(r, 1), :] = emb_ref[pl.ds(tok, 1), :]


def _logits_kernel(tile_n, idx_sref, emb_ref, logits_ref):
    # Inference path (targets=None): pure embedding gather, no CE work.
    _gather_rows(tile_n, idx_sref, emb_ref, logits_ref)


def _logits_loss_kernel(tile_n, v_real, v_pad,
                        idx_sref, tgt_ref, emb_ref, logits_ref, nll_ref):
    # Training path: gather + numerically-stable log-softmax + per-row NLL.
    _gather_rows(tile_n, idx_sref, emb_ref, logits_ref)

    logits = logits_ref[...]                                   # (tile_n, v_pad) f32
    col = jax.lax.broadcasted_iota(jnp.int32, (tile_n, v_pad), 1)

    # Mask padded vocab lanes out of the softmax (finite sentinel avoids inf-inf).
    masked = jnp.where(col < v_real, logits, jnp.float32(-1e30))
    m = jnp.max(masked, axis=-1, keepdims=True)                       # (tile_n, 1)
    lse = jnp.log(jnp.sum(jnp.exp(masked - m), axis=-1, keepdims=True)) + m

    tgt = tgt_ref[...]                                                # (tile_n, 1) i32
    tgt_logit = jnp.sum(jnp.where(col == tgt, logits, 0.0),
                        axis=-1, keepdims=True)                       # (tile_n, 1)
    nll_ref[...] = lse - tgt_logit


# -----------------------------------------------------------------------------
# Wrappers
# -----------------------------------------------------------------------------
def _prep(idx, emb_table, tile_n):
    n = idx.size
    n_pad = _round_up(max(n, 1), tile_n)
    v, c = emb_table.shape
    v_pad = _round_up(c, LANE)
    idx_p = jnp.pad(idx.reshape(-1).astype(jnp.int32), (0, n_pad - n))
    emb_p = jnp.pad(emb_table.astype(jnp.float32), ((0, 0), (0, v_pad - c)))
    return idx_p, emb_p, n, n_pad, v, c, v_pad


@functools.partial(jax.jit, static_argnames=("tile_n",))
def bigram_forward(idx, targets, emb_table, *, tile_n=8):
    """Pallas equivalent of BigramLanguageModel.forward(idx, targets).

    Returns (logits of shape (B*T, V) float32, scalar mean cross-entropy loss).
    """
    tile_n = _round_up(max(tile_n, 8), 8)          # sublane-aligned row tiles
    idx_p, emb_p, n, n_pad, v, c, v_pad = _prep(idx, emb_table, tile_n)
    tgt_p = jnp.pad(targets.reshape(-1).astype(jnp.int32), (0, n_pad - n))
    tgt_p = tgt_p.reshape(n_pad, 1)

    kernel = functools.partial(_logits_loss_kernel, tile_n, c, v_pad)

    logits_p, nll = pl.pallas_call(
        kernel,
        out_shape=(
            jax.ShapeDtypeStruct((n_pad, v_pad), jnp.float32),
            jax.ShapeDtypeStruct((n_pad, 1), jnp.float32),
        ),
        grid_spec=pltpu.PrefetchScalarGridSpec(
            num_scalar_prefetch=1,                 # idx -> SMEM token ids
            grid=(n_pad // tile_n,),
            in_specs=[
                pl.BlockSpec((tile_n, 1), lambda i, idx_ref: (i, 0)),   # targets
                pl.BlockSpec((v, v_pad), lambda i, idx_ref: (0, 0)),    # emb table
            ],
            out_specs=(
                pl.BlockSpec((tile_n, v_pad), lambda i, idx_ref: (i, 0)),  # logits
                pl.BlockSpec((tile_n, 1), lambda i, idx_ref: (i, 0)),      # nll
            ),
        ),
        compiler_params=pltpu.CompilerParams(
            dimension_semantics=("parallel",)),    # v7x: split row tiles over 2 TCs
    )(idx_p, tgt_p, emb_p)

    logits = logits_p[:n, :c]                      # drop row/lane padding
    loss = jnp.sum(nll[:n, 0]) / n                 # finish the mean in plain JAX
    return logits, loss


@functools.partial(jax.jit, static_argnames=("tile_n",))
def bigram_forward_no_targets(idx, emb_table, *, tile_n=8):
    """Forward with targets=None: returns logits of shape (B, T, V), loss=None."""
    B, T = idx.shape
    tile_n = _round_up(max(tile_n, 8), 8)
    idx_p, emb_p, n, n_pad, v, c, v_pad = _prep(idx, emb_table, tile_n)

    kernel = functools.partial(_logits_kernel, tile_n)

    logits_p = pl.pallas_call(
        kernel,
        out_shape=jax.ShapeDtypeStruct((n_pad, v_pad), jnp.float32),
        grid_spec=pltpu.PrefetchScalarGridSpec(
            num_scalar_prefetch=1,
            grid=(n_pad // tile_n,),
            in_specs=[pl.BlockSpec((v, v_pad), lambda i, idx_ref: (0, 0))],
            out_specs=pl.BlockSpec((tile_n, v_pad), lambda i, idx_ref: (i, 0)),
        ),
        compiler_params=pltpu.CompilerParams(
            dimension_semantics=("parallel",)),
    )(idx_p, emb_p)

    return logits_p[:n, :c].reshape(B, T, c), None


if __name__ == "__main__":
    # Small, deterministic setup.
    vocab_size = 65   # e.g. tiny-shakespeare charset size
    B, T = 2, 8

    key = jax.random.PRNGKey(0)
    k_emb, k_idx, k_tgt = jax.random.split(key, 3)

    # nn.Embedding default init: N(0, 1), shape (vocab_size, vocab_size).
    emb_table = jax.random.normal(k_emb, (vocab_size, vocab_size), dtype=jnp.float32)
    idx = jax.random.randint(k_idx, (B, T), 0, vocab_size, dtype=jnp.int32)
    targets = jax.random.randint(k_tgt, (B, T), 0, vocab_size, dtype=jnp.int32)

    # Training path (targets given): logits + mean cross-entropy.
    logits, loss = bigram_forward(idx, targets, emb_table, tile_n=8)
    jax.block_until_ready((logits, loss))

    # Inference path (targets=None): gather-only kernel.
    logits3d, no_loss = bigram_forward_no_targets(idx, emb_table, tile_n=8)
    jax.block_until_ready(logits3d)

    # Pure-JAX reference check (embedding lookup + mean cross-entropy).
    ref_logits = emb_table[idx.reshape(-1)]
    ref_lse = jax.scipy.special.logsumexp(ref_logits, axis=-1)
    ref_loss = jnp.mean(ref_lse - ref_logits[jnp.arange(B * T), targets.reshape(-1)])
    assert jnp.allclose(logits, ref_logits, atol=1e-5), "logits mismatch"
    assert jnp.allclose(loss, ref_loss, atol=1e-5), "loss mismatch"
    assert jnp.allclose(logits3d.reshape(B * T, vocab_size), ref_logits,
                        atol=1e-5), "no-target logits mismatch"
    assert no_loss is None

    # TODO(synk): `generate` uses torch.multinomial sampling in a host-side
    # Python loop; that sampling control flow stays as plain JAX glue, not a kernel.

    print("KERNEL_OK")
</pallas_src>

<mosaic_0001>
module attributes {stable_mosaic.version = 11 : i64} {
  func.func @_logits_loss_kernel(%arg0: i32, %arg1: memref<16xi32, #tpu.memory_space<smem>>, %arg2: memref<8x1xi32, #tpu.memory_space<vmem>>, %arg3: memref<65x128xf32, #tpu.memory_space<vmem>>, %arg4: memref<8x128xf32, #tpu.memory_space<vmem>>, %arg5: memref<8x1xf32, #tpu.memory_space<vmem>>) attributes {dimension_semantics = [#tpu.dimension_semantics<parallel>], iteration_bounds = array<i64: 2>, scalar_prefetch = 1 : i64, scratch_operands = 0 : i64, tpu.core_type = #tpu.core_type<tc>, window_params = [{transform_indices = @transform_0, window_bounds = array<i64: 8, 1>}, {pipeline_mode = #tpu.pipeline_mode<synchronous>, transform_indices = @transform_1, window_bounds = array<i64: 65, 128>}, {transform_indices = @transform_2, window_bounds = array<i64: 8, 128>}, {transform_indices = @transform_3, window_bounds = array<i64: 8, 1>}]} {
    %c8_i32 = arith.constant 8 : i32
    %0 = arith.muli %arg0, %c8_i32 : i32
    %c0_i32 = arith.constant 0 : i32
    %1 = arith.addi %0, %c0_i32 : i32
    %2 = arith.index_cast %1 : i32 to index
    %3 = memref.load %arg1[%2] : memref<16xi32, #tpu.memory_space<smem>>
    %4 = arith.index_cast %3 : i32 to index
    %c0 = arith.constant 0 : index
    %5 = vector.load %arg3[%4, %c0] : memref<65x128xf32, #tpu.memory_space<vmem>>, vector<1x128xf32>
    %c0_0 = arith.constant 0 : index
    %c0_1 = arith.constant 0 : index
    %6 = vector.load %arg4[%c0_0, %c0_1] : memref<8x128xf32, #tpu.memory_space<vmem>>, vector<1x128xf32>
    tpu.vector_store %arg4[%c0_0, %c0_1], %5 {strides = array<i32>} : memref<8x128xf32, #tpu.memory_space<vmem>>, vector<1x128xf32>,
    %c1_i32 = arith.constant 1 : i32
    %7 = arith.addi %0, %c1_i32 : i32
    %8 = arith.index_cast %7 : i32 to index
    %9 = memref.load %arg1[%8] : memref<16xi32, #tpu.memory_space<smem>>
    %10 = arith.index_cast %9 : i32 to index
    %c0_2 = arith.constant 0 : index
    %11 = vector.load %arg3[%10, %c0_2] : memref<65x128xf32, #tpu.memory_space<vmem>>, vector<1x128xf32>
    %c1 = arith.constant 1 : index
    %c0_3 = arith.constant 0 : index
    %12 = vector.load %arg4[%c1, %c0_3] : memref<8x128xf32, #tpu.memory_space<vmem>>, vector<1x128xf32>
    tpu.vector_store %arg4[%c1, %c0_3], %11 {strides = array<i32>} : memref<8x128xf32, #tpu.memory_space<vmem>>, vector<1x128xf32>,
    %c2_i32 = arith.constant 2 : i32
    %13 = arith.addi %0, %c2_i32 : i32
    %14 = arith.index_cast %13 : i32 to index
    %15 = memref.load %arg1[%14] : memref<16xi32, #tpu.memory_space<smem>>
    %16 = arith.index_cast %15 : i32 to index
    %c0_4 = arith.constant 0 : index
    %17 = vector.load %arg3[%16, %c0_4] : memref<65x128xf32, #tpu.memory_space<vmem>>, vector<1x128xf32>
    %c2 = arith.constant 2 : index
    %c0_5 = arith.constant 0 : index
    %18 = vector.load %arg4[%c2, %c0_5] : memref<8x128xf32, #tpu.memory_space<vmem>>, vector<1x128xf32>
    tpu.vector_store %arg4[%c2, %c0_5], %17 {strides = array<i32>} : memref<8x128xf32, #tpu.memory_space<vmem>>, vector<1x128xf32>,
    %c3_i32 = arith.constant 3 : i32
    %19 = arith.addi %0, %c3_i32 : i32
    %20 = arith.index_cast %19 : i32 to index
    %21 = memref.load %arg1[%20] : memref<16xi32, #tpu.memory_space<smem>>
    %22 = arith.index_cast %21 : i32 to index
    %c0_6 = arith.constant 0 : index
    %23 = vector.load %arg3[%22, %c0_6] : memref<65x128xf32, #tpu.memory_space<vmem>>, vector<1x128xf32>
    %c3 = arith.constant 3 : index
    %c0_7 = arith.constant 0 : index
    %24 = vector.load %arg4[%c3, %c0_7] : memref<8x128xf32, #tpu.memory_space<vmem>>, vector<1x128xf32>
    tpu.vector_store %arg4[%c3, %c0_7], %23 {strides = array<i32>} : memref<8x128xf32, #tpu.memory_space<vmem>>, vector<1x128xf32>,
    %c4_i32 = arith.constant 4 : i32
    %25 = arith.addi %0, %c4_i32 : i32
    %26 = arith.index_cast %25 : i32 to index
    %27 = memref.load %arg1[%26] : memref<16xi32, #tpu.memory_space<smem>>
    %28 = arith.index_cast %27 : i32 to index
    %c0_8 = arith.constant 0 : index
    %29 = vector.load %arg3[%28, %c0_8] : memref<65x128xf32, #tpu.memory_space<vmem>>, vector<1x128xf32>
    %c4 = arith.constant 4 : index
    %c0_9 = arith.constant 0 : index
    %30 = vector.load %arg4[%c4, %c0_9] : memref<8x128xf32, #tpu.memory_space<vmem>>, vector<1x128xf32>
    tpu.vector_store %arg4[%c4, %c0_9], %29 {strides = array<i32>} : memref<8x128xf32, #tpu.memory_space<vmem>>, vector<1x128xf32>,
    %c5_i32 = arith.constant 5 : i32
    %31 = arith.addi %0, %c5_i32 : i32
    %32 = arith.index_cast %31 : i32 to index
    %33 = memref.load %arg1[%32] : memref<16xi32, #tpu.memory_space<smem>>
    %34 = arith.index_cast %33 : i32 to index
    %c0_10 = arith.constant 0 : index
    %35 = vector.load %arg3[%34, %c0_10] : memref<65x128xf32, #tpu.memory_space<vmem>>, vector<1x128xf32>
    %c5 = arith.constant 5 : index
    %c0_11 = arith.constant 0 : index
    %36 = vector.load %arg4[%c5, %c0_11] : memref<8x128xf32, #tpu.memory_space<vmem>>, vector<1x128xf32>
    tpu.vector_store %arg4[%c5, %c0_11], %35 {strides = array<i32>} : memref<8x128xf32, #tpu.memory_space<vmem>>, vector<1x128xf32>,
    %c6_i32 = arith.constant 6 : i32
    %37 = arith.addi %0, %c6_i32 : i32
    %38 = arith.index_cast %37 : i32 to index
    %39 = memref.load %arg1[%38] : memref<16xi32, #tpu.memory_space<smem>>
    %40 = arith.index_cast %39 : i32 to index
    %c0_12 = arith.constant 0 : index
    %41 = vector.load %arg3[%40, %c0_12] : memref<65x128xf32, #tpu.memory_space<vmem>>, vector<1x128xf32>
    %c6 = arith.constant 6 : index
    %c0_13 = arith.constant 0 : index
    %42 = vector.load %arg4[%c6, %c0_13] : memref<8x128xf32, #tpu.memory_space<vmem>>, vector<1x128xf32>
    tpu.vector_store %arg4[%c6, %c0_13], %41 {strides = array<i32>} : memref<8x128xf32, #tpu.memory_space<vmem>>, vector<1x128xf32>,
    %c7_i32 = arith.constant 7 : i32
    %43 = arith.addi %0, %c7_i32 : i32
    %44 = arith.index_cast %43 : i32 to index
    %45 = memref.load %arg1[%44] : memref<16xi32, #tpu.memory_space<smem>>
    %46 = arith.index_cast %45 : i32 to index
    %c0_14 = arith.constant 0 : index
    %47 = vector.load %arg3[%46, %c0_14] : memref<65x128xf32, #tpu.memory_space<vmem>>, vector<1x128xf32>
    %c7 = arith.constant 7 : index
    %c0_15 = arith.constant 0 : index
    %48 = vector.load %arg4[%c7, %c0_15] : memref<8x128xf32, #tpu.memory_space<vmem>>, vector<1x128xf32>
    tpu.vector_store %arg4[%c7, %c0_15], %47 {strides = array<i32>} : memref<8x128xf32, #tpu.memory_space<vmem>>, vector<1x128xf32>,
    %c0_16 = arith.constant 0 : index
    %c0_17 = arith.constant 0 : index
    %49 = vector.load %arg4[%c0_16, %c0_17] : memref<8x128xf32, #tpu.memory_space<vmem>>, vector<8x128xf32>
    %50 = tpu.iota {dimensions = array<i32: 1>} : vector<8x128xi32>
    %c65_i32 = arith.constant 65 : i32
    %51 = vector.broadcast %c65_i32 : i32 to vector<8x128xi32>
    %52 = arith.cmpi slt, %50, %51 : vector<8x128xi32>
    %cst = arith.constant -1.000000e+30 : f32
    %53 = vector.broadcast %cst : f32 to vector<8x128xf32>
    %54 = arith.select %52, %49, %53 : vector<8x128xi1>, vector<8x128xf32>
    %cst_18 = arith.constant dense<0xFF800000> : vector<8xf32>
    %55 = vector.multi_reduction <maximumf>, %54, %cst_18 [1] : vector<8x128xf32> to vector<8xf32>
    %56 = vector.shape_cast %55 : vector<8xf32> to vector<8x1xf32>
    %57 = vector.broadcast %56 : vector<8x1xf32> to vector<8x128xf32>
    %58 = arith.subf %54, %57 : vector<8x128xf32>
    %59 = math.exp %58 : vector<8x128xf32>
    %cst_19 = arith.constant dense<0.000000e+00> : vector<8xf32>
    %60 = vector.multi_reduction <add>, %59, %cst_19 [1] : vector<8x128xf32> to vector<8xf32>
    %61 = vector.shape_cast %60 : vector<8xf32> to vector<8x1xf32>
    %62 = math.log %61 : vector<8x1xf32>
    %63 = arith.addf %62, %56 : vector<8x1xf32>
    %c0_20 = arith.constant 0 : index
    %c0_21 = arith.constant 0 : index
    %64 = vector.load %arg2[%c0_20, %c0_21] : memref<8x1xi32, #tpu.memory_space<vmem>>, vector<8x1xi32>
    %65 = vector.broadcast %64 : vector<8x1xi32> to vector<8x128xi32>
    %66 = arith.cmpi eq, %50, %65 : vector<8x128xi32>
    %cst_22 = arith.constant 0.000000e+00 : f32
    %67 = vector.broadcast %cst_22 : f32 to vector<8x128xf32>
    %68 = arith.select %66, %49, %67 : vector<8x128xi1>, vector<8x128xf32>
    %cst_23 = arith.constant dense<0.000000e+00> : vector<8xf32>
    %69 = vector.multi_reduction <add>, %68, %cst_23 [1] : vector<8x128xf32> to vector<8xf32>
    %70 = vector.shape_cast %69 : vector<8xf32> to vector<8x1xf32>
    %71 = arith.subf %63, %70 : vector<8x1xf32>
    %c0_24 = arith.constant 0 : index
    %c0_25 = arith.constant 0 : index
    %72 = vector.load %arg5[%c0_24, %c0_25] : memref<8x1xf32, #tpu.memory_space<vmem>>, vector<8x1xf32>
    tpu.vector_store %arg5[%c0_24, %c0_25], %71 {strides = array<i32>} : memref<8x1xf32, #tpu.memory_space<vmem>>, vector<8x1xf32>,
    return
  }
  func.func @transform_0(%arg0: i32, %arg1: memref<16xi32, #tpu.memory_space<smem>>) -> (i32, i32) {
    %c0_i32 = arith.constant 0 : i32
    %c0_i32_0 = arith.constant 0 : i32
    return %arg0, %c0_i32 : i32, i32
  }
  func.func @transform_1(%arg0: i32, %arg1: memref<16xi32, #tpu.memory_space<smem>>) -> (i32, i32) {
    %c0_i32 = arith.constant 0 : i32
    %c0_i32_0 = arith.constant 0 : i32
    %c0_i32_1 = arith.constant 0 : i32
    return %c0_i32, %c0_i32_0 : i32, i32
  }
  func.func @transform_2(%arg0: i32, %arg1: memref<16xi32, #tpu.memory_space<smem>>) -> (i32, i32) {
    %c0_i32 = arith.constant 0 : i32
    %c0_i32_0 = arith.constant 0 : i32
    return %arg0, %c0_i32 : i32, i32
  }
  func.func @transform_3(%arg0: i32, %arg1: memref<16xi32, #tpu.memory_space<smem>>) -> (i32, i32) {
    %c0_i32 = arith.constant 0 : i32
    %c0_i32_0 = arith.constant 0 : i32
    return %arg0, %c0_i32 : i32, i32
  }
}

</mosaic_0001>

<llo_original>
// kernel: bigram_forward.1
$region0: #{bigram_forward.1}
  #allocation0 [shape = 'u32[]', space=smem, size = 0x4, offset = 0x4, fixed_abs, tag = 'smem constant byte address 0x4 - core index']
  #allocation1 [shape = 'u32[144,128]{1,0:T(1,128)}', space=vmem, size = 0x12000, scoped, tag = 'internal scratch']
  #allocation2 [shape = 's32[1]{0}', space=sflag, size = 0x4, scoped, tag = 'scoped memory for bigram_forward.1']
  #allocation3 [shape = 'u8[512]{0}', space=smem, size = 0x200, scoped, tag = 'prefetched SMEM operand 0']
  %s0 = inlined_call_operand.vmem [shape: s32[16], index: 0, kind: input, shape index: {}]
  %s1 = inlined_call_operand.vmem [shape: s32[16,1], index: 1, kind: input, shape index: {}]
  %s2 = inlined_call_operand.vmem [shape: f32[65,128], index: 2, kind: input, shape index: {}]
  %s3 = inlined_call_operand.hbm [shape: f32[16,128], index: 3, kind: output, shape index: {0}]
  %s4 = inlined_call_operand.vmem [shape: f32[16,1], index: 4, kind: output, shape index: {1}]
  %5 = xla_tuple %s3, %s4
  %s6 = sld [smem:[#allocation0]]
  $region49: #{bigram_forward.1} parent=0
    _
  %s8 = ssub.s32 1, %s6
  %s9 = scalar_select 0, %s8, %s6
  %s10 = sshll.u32 %s0, 4
  %s11 = int_to_ptr.vmem [resolvable:$true] %s10
  %13 = dma.vmem_to_smem %s11, 16, [#allocation3], [#allocation2]
  %14 = dma.done [#allocation2], 16
  %15 = sfence
  $region1: #{bigram_forward.1} parent=0
    #allocation4 [shape = 'u8[8192]{0}', space=vmem, size = 0x2000, scoped, tag = 'output window, operand 0']
    #allocation5 [shape = 's32[2]{0}', space=sflag, size = 0x8, scoped, tag = 'scoped memory for bigram_forward.1']
    %16 = vsyncpa [#allocation5], 0
    %s17 = scalar_lea.sflag [#allocation5], 1
    %18 = vsyncpa %s17, 0
    loop: start=0, step=1, limit=4
    $region2: #{bigram_forward.1} parent=1 // loop_pre_header
      _
    $region3: #{bigram_forward.1} parent=1 // loop_header
      %s20 = sphi 0, %s24
      %p21 = scmp.ge.s32.totalorder %s20, 4
      %s30 = sphi 0, %s32
      %s33 = sphi 0, %s30
      %s34 = sphi 0, %s33
      %s50 = sphi 0, %s34
      %s54 = sphi 0, %s54
      %s56 = sphi 0, %s54
      %s57 = sphi 0, %s56
      %s71 = sphi 0, %s57
      %s77 = sphi 0, %s79
      %s80 = sphi 0, %s77
      %s81 = sphi 0, %s80
      %s97 = sphi 0, %s81
      %s103 = sphi 0, %s105
      %s106 = sphi 0, %s103
      %s107 = sphi 0, %s106
      %s123 = sphi 0, %s107
    $region4: #{bigram_forward.1} parent=1 // loop_header_branch
      %23 = sbr.rel (%p21) target = $region8
    $region5: #{bigram_forward.1} parent=1 // loop_body
      %s25 = ssub.s32 %s20, 1
      %s26 = ssub.s32 %s20, 2
      %s27 = sadd.s32 %s20, 1
      %s28 = ssub.s32 %s20, %s27
      %p29 = scmp.eq.s32.totalorder %s28, 0
      %s31 = sadd.s32 %s30, 1
      %s32 = scalar_select %p29, %s30, %s31
      %p35 = pneg %p29
      %p36 = scmp.eq.s32.totalorder %s20, 1
      %p37 = por %p35, %p36
      %p38 = scmp.ne.s32.totalorder %s30, %s33
      %p39 = scmp.eq.s32.totalorder %s20, 0
      %p40 = por %p38, %p39
      %p41 = scmp.ne.s32.totalorder %s30, %s33
      %p42 = scmp.eq.s32.totalorder %s25, 1
      %p43 = por %p41, %p42
      %p44 = scmp.ne.s32.totalorder %s33, %s34
      %p45 = scmp.eq.s32.totalorder %s25, 0
      %p46 = por %p44, %p45
      %p47 = scmp.ne.s32.totalorder %s33, %s34
      %p48 = scmp.eq.s32.totalorder %s26, 1
      %p49 = por %p47, %p48
      %p51 = scmp.ne.s32.totalorder %s34, %s50
      %p52 = scmp.eq.s32.totalorder %s26, 0
      %p53 = por %p51, %p52
      %s55 = sadd.s32 %s54, 1
      %p58 = scmp.eq.s32.totalorder %s20, 1
      %p59 = scmp.ne.s32.totalorder %s54, %s56
      %p60 = scmp.eq.s32.totalorder %s20, 0
      %p61 = por %p59, %p60
      %p62 = scmp.ne.s32.totalorder %s54, %s56
      %p63 = scmp.eq.s32.totalorder %s25, 1
      %p64 = por %p62, %p63
      %p65 = scmp.ne.s32.totalorder %s56, %s57
      %p66 = scmp.eq.s32.totalorder %s25, 0
      %p67 = por %p65, %p66
      %p68 = scmp.ne.s32.totalorder %s56, %s57
      %p69 = scmp.eq.s32.totalorder %s26, 1
      %p70 = por %p68, %p69
      %p72 = scmp.ne.s32.totalorder %s57, %s71
      %p73 = scmp.eq.s32.totalorder %s26, 0
      %p74 = por %p72, %p73
      %s75 = ssub.s32 %s20, %s27
      %p76 = scmp.eq.s32.totalorder %s75, 0
      %s78 = sadd.s32 %s77, 1
      %s79 = scalar_select %p76, %s77, %s78
      %p82 = pneg %p76
      %p83 = scmp.eq.s32.totalorder %s20, 1
      %p84 = por %p82, %p83
      %p85 = scmp.ne.s32.totalorder %s77, %s80
      %p86 = scmp.eq.s32.totalorder %s20, 0
      %p87 = por %p85, %p86
      %p88 = scmp.ne.s32.totalorder %s77, %s80
      %p89 = scmp.eq.s32.totalorder %s25, 1
      %p90 = por %p88, %p89
      %p91 = scmp.ne.s32.totalorder %s80, %s81
      %p92 = scmp.eq.s32.totalorder %s25, 0
      %p93 = por %p91, %p92
      %p94 = scmp.ne.s32.totalorder %s80, %s81
      %p95 = scmp.eq.s32.totalorder %s26, 1
      %p96 = por %p94, %p95
      %p98 = scmp.ne.s32.totalorder %s81, %s97
      %p99 = scmp.eq.s32.totalorder %s26, 0
      %p100 = por %p98, %p99
      %s101 = ssub.s32 %s20, %s27
      %p102 = scmp.eq.s32.totalorder %s101, 0
      %s104 = sadd.s32 %s103, 1
      %s105 = scalar_select %p102, %s103, %s104
      %p108 = pneg %p102
      %p109 = scmp.eq.s32.totalorder %s20, 1
      %p110 = por %p108, %p109
      %p111 = scmp.ne.s32.totalorder %s103, %s106
      %p112 = scmp.eq.s32.totalorder %s20, 0
      %p113 = por %p111, %p112
      %p114 = scmp.ne.s32.totalorder %s103, %s106
      %p115 = scmp.eq.s32.totalorder %s25, 1
      %p116 = por %p114, %p115
      %p117 = scmp.ne.s32.totalorder %s106, %s107
      %p118 = scmp.eq.s32.totalorder %s25, 0
      %p119 = por %p117, %p118
      %p120 = scmp.ne.s32.totalorder %s106, %s107
      %p121 = scmp.eq.s32.totalorder %s26, 1
      %p122 = por %p120, %p121
      %p124 = scmp.ne.s32.totalorder %s107, %s123
      %p125 = scmp.eq.s32.totalorder %s26, 0
      %p126 = por %p124, %p125
      %p127 = scmp.le.s32.totalorder 1, %s20
      %p128 = scmp.lt.s32.totalorder %s20, 3
      %p129 = pnand %p127, %p128
      %p130 = pneg %p129
      // Predicated region
      $region9: #{bigram_forward.1} parent=5 // pred_check
        _
      $region10: #{bigram_forward.1} parent=5 // pred_check_branch
        %132 = sbr.rel (%p129) target = $region12
      $region11: #{bigram_forward.1} parent=5 // pred_region
        %s133 = ssub.s32 %s20, 1
        // Predicated region
        $region13: #{bigram_forward.1} parent=11 // pred_check
          %p134 = pneg %p67
        $region14: #{bigram_forward.1} parent=11 // pred_check_branch
          %136 = sbr.rel (%p134) target = $region16
        $region15: #{bigram_forward.1} parent=11 // pred_region
          _
        $region16: #{bigram_forward.1} parent=11 // pred_fallthru
          _
      $region12: #{bigram_forward.1} parent=5 // pred_fallthru
        _
      %p137 = scmp.lt.s32.totalorder %s20, 2
      // Predicated region
      $region17: #{bigram_forward.1} parent=5 // pred_check
        %p138 = pneg %p137
      $region18: #{bigram_forward.1} parent=5 // pred_check_branch
        %140 = sbr.rel (%p138) target = $region20
      $region19: #{bigram_forward.1} parent=5 // pred_region
        // Predicated region
        $region21: #{bigram_forward.1} parent=19 // pred_check
          %p141 = pneg %p40
        $region22: #{bigram_forward.1} parent=19 // pred_check_branch
          %143 = sbr.rel (%p141) target = $region24
        $region23: #{bigram_forward.1} parent=19 // pred_region
          %p144 = scmp.lt.s32.totalorder %s20, 1
          %s145 = scalar_select %p144, %s20, 1
          %s146 = smul.addr %s145, 8
          %s147 = scalar_lea.vmem %s1, %s146
        $region24: #{bigram_forward.1} parent=19 // pred_fallthru
          _
      $region20: #{bigram_forward.1} parent=5 // pred_fallthru
        _
      %p148 = scmp.le.s32.totalorder 1, %s20
      %p149 = scmp.lt.s32.totalorder %s20, 3
      %p150 = pnand %p148, %p149
      %p151 = pneg %p150
      // Predicated region
      $region25: #{bigram_forward.1} parent=5 // pred_check
        _
      $region26: #{bigram_forward.1} parent=5 // pred_check_branch
        %153 = sbr.rel (%p150) target = $region28
      $region27: #{bigram_forward.1} parent=5 // pred_region
        %s154 = ssub.s32 %s20, 1
        %p155 = scmp.lt.s32.totalorder %s25, 1
        %s156 = scalar_select %p155, %s25, 1
        %s157 = smul.addr %s156, 8
        %s158 = scalar_lea.vmem %s1, %s157
        %p159 = pneg %p46
        %p160 = pneg %p43
        %p161 = pneg %p67
        %p162 = pneg %p64
        %p163 = pneg %p93
        %p164 = pneg %p90
        %s165 = sand.u32 %s80, 1
        %s166 = scalar_lea.sflag [#allocation5], %s165
        %s167 = sand.u32 %s80, 1
        %s168 = smul.addr %s167, 8
        %s169 = scalar_lea.vmem [#allocation4], %s168
        %p170 = pneg %p119
        %p171 = pneg %p116
        %p172 = scmp.lt.s32.totalorder %s25, 1
        %s173 = scalar_select %p172, %s25, 1
        %s174 = smul.addr %s173, 8
        %s175 = scalar_lea.vmem %s4, %s174
        %p176 = scmp.lt.s32.totalorder %s25, 1
        %s177 = scalar_select %p176, %s25, 1
        %s178 = smul.addr %s177, 8
        %s179 = scalar_lea.vmem %s1, %s178
        %p180 = scmp.lt.s32.totalorder %s25, 1
        %s181 = scalar_select %p180, %s25, 1
        %s182 = smul.addr %s181, 8
        %s183 = scalar_lea.vmem %s4, %s182
        %s184 = smul.u32 %s25, 8
        %s185 = sld [smem:[#allocation3 + %s184]]
        %s186 = scalar_lea.vmem %s2, %s185
        %v187 = vld [vmem:[%s186] sm:$0x1]
        %188 = vst [vmem:[%s169] sm:$0x1] %v187
        %s189 = sadd.s32 %s184, 1
        %s190 = sld [smem:[#allocation3 + %s189]]
        %s191 = scalar_lea.vmem %s2, %s190
        %v192 = vld [vmem:[%s191] sm:$0x1]
        %193 = vst [vmem:[%s169 + $0x1] sm:$0x1] %v192
        %s194 = sadd.s32 %s184, 2
        %s195 = sld [smem:[#allocation3 + %s194]]
        %s196 = scalar_lea.vmem %s2, %s195
        %v197 = vld [vmem:[%s196] sm:$0x1]
        %198 = vst [vmem:[%s169 + $0x2] sm:$0x1] %v197
        %s199 = sadd.s32 %s184, 3
        %s200 = sld [smem:[#allocation3 + %s199]]
        %s201 = scalar_lea.vmem %s2, %s200
        %v202 = vld [vmem:[%s201] sm:$0x1]
        %203 = vst [vmem:[%s169 + $0x3] sm:$0x1] %v202
        %s204 = sadd.s32 %s184, 4
        %s205 = sld [smem:[#allocation3 + %s204]]
        %s206 = scalar_lea.vmem %s2, %s205
        %v207 = vld [vmem:[%s206] sm:$0x1]
        %208 = vst [vmem:[%s169 + $0x4] sm:$0x1] %v207
        %s209 = sadd.s32 %s184, 5
        %s210 = sld [smem:[#allocation3 + %s209]]
        %s211 = scalar_lea.vmem %s2, %s210
        %v212 = vld [vmem:[%s211] sm:$0x1]
        %213 = vst [vmem:[%s169 + $0x5] sm:$0x1] %v212
        %s214 = sadd.s32 %s184, 6
        %s215 = sld [smem:[#allocation3 + %s214]]
        %s216 = scalar_lea.vmem %s2, %s215
        %v217 = vld [vmem:[%s216] sm:$0x1]
        %218 = vst [vmem:[%s169 + $0x6] sm:$0x1] %v217
        %s219 = sadd.s32 %s184, 7
        %s220 = sld [smem:[#allocation3 + %s219]]
        %s221 = scalar_lea.vmem %s2, %s220
        %v222 = vld [vmem:[%s221] sm:$0x1]
        %223 = vst [vmem:[%s169 + $0x7] sm:$0x1] %v222
        %v224 = vld [vmem:[%s169] sm:$0xff]
        %v225 = vlaneseq
        %v226 = vand.u32 %v225, 127
        %vm227 = vcmp.lt.s32.totalorder %v226, 65
        %v228 = vsel %vm227, %v224, -1e+30
        %229 = vmax.xlane.f32.xlu0 %v228
        %v230 = vpop.xlane.xlu0 %229
        %v231 = vsub.f32 %v228, %v230
        %v232 = vmul.f32 %v231, 1.442695
        %v233 = vpow.pop %v232
        %234 = vadd.xlane.f32.xlu0 %v233
        %v235 = vpop.xlane.xlu0 %234
        %v236 = vlog2.pop %v235
        %v237 = vmul.f32 %v236, 0.6931472
        %v238 = vadd.f32 %v237, %v230
        %v239 = vld [vmem:[%s179] sm:$0xff]
        %240 = vset.pattern.permute.xlu0 0
        %241 = vperm.xlu0 %240, %v239
        %v242 = vpop.permute.xlu0 %241
        %vm243 = vcmp.eq.s32.totalorder %v226, %v242
        %v244 = vsel %vm243, %v224, 0.0
        %245 = vadd.xlane.f32.xlu0 %v244
        %v246 = vpop.xlane.xlu0 %245
        %v247 = vsub.f32 %v238, %v246
        %vm248 = vcmask 7168
        %249 = vst.msk [vmem:[%s183] sm:$0xff] %vm248, %v247
        %s250 = sand.u32 %s80, 1
        %s251 = scalar_lea.sflag [#allocation5], %s250
        %s252 = sand.u32 %s80, 1
        %s253 = smul.addr %s252, 8
        %s254 = scalar_lea.vmem [#allocation4], %s253
        %p255 = scmp.lt.s32.totalorder %s25, 1
        %s256 = scalar_select %p255, %s25, 1
        %s257 = smul.addr %s256, 8
        %s258 = scalar_lea.vmem %s4, %s257
        // Predicated region
        $region29: #{bigram_forward.1} parent=27 // pred_check
          %p259 = pneg %p90
        $region30: #{bigram_forward.1} parent=27 // pred_check_branch
          %261 = sbr.rel (%p259) target = $region32
        $region31: #{bigram_forward.1} parent=27 // pred_region
          %s263 = ssub.s32 128, 128
          %264 = vsyncadd %s251, %s263
          %s265 = smul.addr %s25, 128
          %s266 = scalar_lea.hbm %s3, %s265
          %s268 = sshll.u32 %s254, 4
          %s269 = int_to_ptr.vmem [resolvable:$true] %s268
          %271 = dma.vmem_to_hbm [thread:$0]  %s269, 128, %s266, %s251
        $region32: #{bigram_forward.1} parent=27 // pred_fallthru
          _
        // Predicated region
        $region33: #{bigram_forward.1} parent=27 // pred_check
          %p272 = pneg %p116
        $region34: #{bigram_forward.1} parent=27 // pred_check_branch
          %274 = sbr.rel (%p272) target = $region36
        $region35: #{bigram_forward.1} parent=27 // pred_region
          _
        $region36: #{bigram_forward.1} parent=27 // pred_fallthru
          _
      $region28: #{bigram_forward.1} parent=5 // pred_fallthru
        _
      %p275 = scmp.le.s32.totalorder 2, %s20
      // Predicated region
      $region37: #{bigram_forward.1} parent=5 // pred_check
        %p276 = pneg %p275
      $region38: #{bigram_forward.1} parent=5 // pred_check_branch
        %278 = sbr.rel (%p276) target = $region40
      $region39: #{bigram_forward.1} parent=5 // pred_region
        %s279 = ssub.s32 %s20, 2
        // Predicated region
        $region41: #{bigram_forward.1} parent=39 // pred_check
          %p280 = pneg %p96
        $region42: #{bigram_forward.1} parent=39 // pred_check_branch
          %282 = sbr.rel (%p280) target = $region44
        $region43: #{bigram_forward.1} parent=39 // pred_region
          %s283 = sand.u32 %s81, 1
          %s284 = scalar_lea.sflag [#allocation5], %s283
          %s285 = sand.u32 %s81, 1
          %s286 = smul.addr %s285, 8
          %s287 = scalar_lea.vmem [#allocation4], %s286
          %288 = dma.done %s284, 128
        $region44: #{bigram_forward.1} parent=39 // pred_fallthru
          _
        // Predicated region
        $region45: #{bigram_forward.1} parent=39 // pred_check
          %p289 = pneg %p122
        $region46: #{bigram_forward.1} parent=39 // pred_check_branch
          %291 = sbr.rel (%p289) target = $region48
        $region47: #{bigram_forward.1} parent=39 // pred_region
          %p292 = scmp.lt.s32.totalorder %s26, 1
          %s293 = scalar_select %p292, %s26, 1
          %s294 = smul.addr %s293, 8
          %s295 = scalar_lea.vmem %s4, %s294
        $region48: #{bigram_forward.1} parent=39 // pred_fallthru
          _
      $region40: #{bigram_forward.1} parent=5 // pred_fallthru
        _
    $region6: #{bigram_forward.1} parent=1 // loop_footer
      %s24 = sadd.s32 1, %s20
    $region7: #{bigram_forward.1} parent=1 // loop_footer_branch
      %19 = sbr.rel target = $region3
    $region8: #{bigram_forward.1} parent=1 // loop_exit
      _
    %296 = vsyncpa [#allocation5], 1
    %s297 = scalar_lea.sflag [#allocation5], 1
    %298 = vsyncpa %s297, 1

</llo_original>
